<compile_context>
chip_gen: v7x
topology: tpu7x:2x2x1
jax: 0.10.0
libtpu: 0.0.40
codegen_flags: <defaults>
</compile_context>

<pallas_src>
import numpy as np
import jax
import jax.numpy as jnp
from jax.experimental import pallas as pl
from jax.experimental.pallas import tpu as pltpu


def _tv_kernel(x_ref, out_ref):
    """x_ref: (TB, H, W) block of image planes; out_ref: (1, 1) f32 accumulator."""

    @pl.when(pl.program_id(0) == 0)
    def _init():
        out_ref[...] = jnp.zeros_like(out_ref)

    x = x_ref[...].astype(jnp.float32)

    # horizontal variation (along W, the lane axis)
    wd = x[:, :, 1:] - x[:, :, :-1]
    # vertical variation (along H, the sublane axis)
    hd = x[:, 1:, :] - x[:, :-1, :]

    partial = jnp.sum(wd * wd) + jnp.sum(hd * hd)
    out_ref[...] += partial


def total_variation_loss(x_nchw, tv_weight=1.0):
    """TV loss of an NCHW image, weighted by tv_weight. Returns a scalar."""
    x = jnp.asarray(x_nchw, jnp.float32)
    N, C, H, W = x.shape
    B = N * C
    xb = x.reshape(B, H, W)

    # Block over the fused plane axis: as many planes as fit ~4 MiB per buffer
    # (double-buffered by the pipeline), capped at B.
    bytes_per_plane = H * W * 4
    tb = max(1, min(B, (4 * 1024 * 1024) // max(bytes_per_plane, 1)))
    grid_b = pl.cdiv(B, tb)
    b_padded = grid_b * tb
    if b_padded != B:
        # Zero planes contribute exactly 0 to both variations (diffs stay
        # within a plane), so padding the plane axis is semantics-preserving.
        xb = jnp.pad(xb, ((0, b_padded - B), (0, 0), (0, 0)))

    cost = pl.CostEstimate(
        flops=6 * b_padded * H * W,          # 2 dirs x (sub + mul + add) per elem
        transcendentals=0,
        bytes_accessed=b_padded * H * W * 4 + 4,
    )

    out = pl.pallas_call(
        _tv_kernel,
        out_shape=jax.ShapeDtypeStruct((1, 1), jnp.float32),
        grid=(grid_b,),
        in_specs=[pl.BlockSpec((tb, H, W), lambda i: (i, 0, 0))],
        out_specs=pl.BlockSpec((1, 1), lambda i: (0, 0)),
        compiler_params=pltpu.CompilerParams(
            dimension_semantics=("arbitrary",),   # reduction into shared output
        ),
        cost_estimate=cost,
    )(xb)

    return tv_weight * out[0, 0]


# --------------------------- pure-JAX reference check --------------------------
def reference_tv_loss(x_nchw, tv_weight=1.0):
    x = jnp.asarray(x_nchw, jnp.float32)
    w_variance = jnp.sum((x[:, :, :, :-1] - x[:, :, :, 1:]) ** 2)
    h_variance = jnp.sum((x[:, :, :-1, :] - x[:, :, 1:, :]) ** 2)
    return tv_weight * (h_variance + w_variance)


if __name__ == "__main__":
    key = jax.random.PRNGKey(0)
    N, C, H, W = 2, 4, 16, 16
    tv_weight = 0.5

    x = jax.random.normal(key, (N, C, H, W), jnp.float32)

    out = jax.block_until_ready(total_variation_loss(x, tv_weight))
    ref = jax.block_until_ready(reference_tv_loss(x, tv_weight))

    np.testing.assert_allclose(np.asarray(out), np.asarray(ref),
                               rtol=1e-4, atol=1e-4)
    print("KERNEL_OK")
</pallas_src>

<mosaic_0001>
module attributes {stable_mosaic.version = 11 : i64} {
  func.func @_tv_kernel(%arg0: i32, %arg1: memref<8x16x16xf32, #tpu.memory_space<vmem>>, %arg2: memref<1x1xf32, #tpu.memory_space<vmem>>) attributes {dimension_semantics = [#tpu.dimension_semantics<arbitrary>], iteration_bounds = array<i64: 1>, scalar_prefetch = 0 : i64, scratch_operands = 0 : i64, tpu.core_type = #tpu.core_type<tc>, window_params = [{transform_indices = @transform_0, window_bounds = array<i64: 8, 16, 16>}, {pipeline_mode = #tpu.pipeline_mode<synchronous>, transform_indices = @transform_1, window_bounds = array<i64: 1, 1>}]} {
    %c0_i32 = arith.constant 0 : i32
    %0 = arith.cmpi eq, %arg0, %c0_i32 : i32
    %1 = arith.extui %0 : i1 to i32
    %c0_i32_0 = arith.constant 0 : i32
    %2 = arith.cmpi ne, %1, %c0_i32_0 : i32
    scf.if %2 {
      %cst_8 = arith.constant 0.000000e+00 : f32
      %25 = vector.broadcast %cst_8 : f32 to vector<1x1xf32>
      %c0_9 = arith.constant 0 : index
      %c0_10 = arith.constant 0 : index
      %26 = vector.load %arg2[%c0_9, %c0_10] : memref<1x1xf32, #tpu.memory_space<vmem>>, vector<1x1xf32>
      tpu.vector_store %arg2[%c0_9, %c0_10], %25 {strides = array<i32>} : memref<1x1xf32, #tpu.memory_space<vmem>>, vector<1x1xf32>,
    } else {
    }
    %c0 = arith.constant 0 : index
    %c0_1 = arith.constant 0 : index
    %c0_2 = arith.constant 0 : index
    %3 = vector.load %arg1[%c0, %c0_1, %c0_2] : memref<8x16x16xf32, #tpu.memory_space<vmem>>, vector<8x16x16xf32>
    %4 = vector.extract_strided_slice %3 {offsets = [0, 0, 1], sizes = [8, 16, 15], strides = [1, 1, 1]} : vector<8x16x16xf32> to vector<8x16x15xf32>
    %5 = vector.extract_strided_slice %3 {offsets = [0, 0, 0], sizes = [8, 16, 15], strides = [1, 1, 1]} : vector<8x16x16xf32> to vector<8x16x15xf32>
    %6 = arith.subf %4, %5 : vector<8x16x15xf32>
    %7 = vector.extract_strided_slice %3 {offsets = [0, 1, 0], sizes = [8, 15, 16], strides = [1, 1, 1]} : vector<8x16x16xf32> to vector<8x15x16xf32>
    %8 = vector.extract_strided_slice %3 {offsets = [0, 0, 0], sizes = [8, 15, 16], strides = [1, 1, 1]} : vector<8x16x16xf32> to vector<8x15x16xf32>
    %9 = arith.subf %7, %8 : vector<8x15x16xf32>
    %10 = arith.mulf %6, %6 : vector<8x16x15xf32>
    %11 = vector.shape_cast %10 : vector<8x16x15xf32> to vector<1x8x16x15xf32>
    %cst = arith.constant dense<0.000000e+00> : vector<1xf32>
    %12 = vector.multi_reduction <add>, %11, %cst [1, 2, 3] : vector<1x8x16x15xf32> to vector<1xf32>
    %13 = vector.shape_cast %12 : vector<1xf32> to vector<1x1x1x1xf32>
    %14 = vector.extract %13[0, 0, 0, 0] : f32 from vector<1x1x1x1xf32>
    %15 = arith.mulf %9, %9 : vector<8x15x16xf32>
    %16 = vector.shape_cast %15 : vector<8x15x16xf32> to vector<1x8x15x16xf32>
    %cst_3 = arith.constant dense<0.000000e+00> : vector<1xf32>
    %17 = vector.multi_reduction <add>, %16, %cst_3 [1, 2, 3] : vector<1x8x15x16xf32> to vector<1xf32>
    %18 = vector.shape_cast %17 : vector<1xf32> to vector<1x1x1x1xf32>
    %19 = vector.extract %18[0, 0, 0, 0] : f32 from vector<1x1x1x1xf32>
    %20 = arith.addf %14, %19 : f32
    %c0_4 = arith.constant 0 : index
    %c0_5 = arith.constant 0 : index
    %21 = vector.load %arg2[%c0_4, %c0_5] : memref<1x1xf32, #tpu.memory_space<vmem>>, vector<1x1xf32>
    %22 = vector.broadcast %20 : f32 to vector<1x1xf32>
    %23 = arith.addf %21, %22 : vector<1x1xf32>
    %c0_6 = arith.constant 0 : index
    %c0_7 = arith.constant 0 : index
    %24 = vector.load %arg2[%c0_6, %c0_7] : memref<1x1xf32, #tpu.memory_space<vmem>>, vector<1x1xf32>
    tpu.vector_store %arg2[%c0_6, %c0_7], %23 {strides = array<i32>} : memref<1x1xf32, #tpu.memory_space<vmem>>, vector<1x1xf32>,
    return
  }
  func.func @transform_0(%arg0: i32) -> (i32, i32, i32) {
    %c0_i32 = arith.constant 0 : i32
    %c0_i32_0 = arith.constant 0 : i32
    %c0_i32_1 = arith.constant 0 : i32
    return %arg0, %c0_i32, %c0_i32_0 : i32, i32, i32
  }
  func.func @transform_1(%arg0: i32) -> (i32, i32) {
    %c0_i32 = arith.constant 0 : i32
    %c0_i32_0 = arith.constant 0 : i32
    %c0_i32_1 = arith.constant 0 : i32
    return %c0_i32, %c0_i32_0 : i32, i32
  }
}

</mosaic_0001>

<llo_original>
// kernel: tpu_custom_call.1
$region0: #{tpu_custom_call.1}
  #allocation0 [shape = 'u32[]', space=smem, size = 0x4, offset = 0x4, fixed_abs, tag = 'smem constant byte address 0x4 - core index']
  #allocation1 [shape = 'u32[144,128]{1,0:T(1,128)}', space=vmem, size = 0x12000, scoped, tag = 'internal scratch']
  %s0 = inlined_call_operand.hbm [shape: f32[8,16,16], index: 0, kind: input, shape index: {}]
  %s1 = inlined_call_operand.hbm [shape: f32[1,1], index: 1, kind: output, shape index: {}]
  %s2 = sld [smem:[#allocation0]]
  $region22: #{tpu_custom_call.1} parent=0
    _
  %s4 = ssub.s32 1, %s2
  %s5 = scalar_select 0, %s4, %s2
  $region1: #{tpu_custom_call.1} parent=0
    #allocation2 [shape = 'u8[65536]{0}', space=vmem, size = 0x10000, scoped, tag = 'input window, operand 0, single buffered']
    #allocation3 [shape = 's32[1]{0}', space=sflag, size = 0x4, scoped, tag = 'scoped memory for tpu_custom_call.1']
    #allocation4 [shape = 's32[1]{0}', space=sflag, size = 0x4, scoped, tag = 'scoped memory for tpu_custom_call.1']
    #allocation5 [shape = 'u8[512]{0}', space=vmem, size = 0x400, scoped, tag = 'output window, operand 0, single buffered']
    %6 = vsyncpa [#allocation3], 0
    %7 = vsyncpa [#allocation4], 0
    // Predicated region
    $region2: #{tpu_custom_call.1} parent=1 // pred_check
      _
    $region3: #{tpu_custom_call.1} parent=1 // pred_check_branch
      %9 = sbr.rel (0) target = $region5
    $region4: #{tpu_custom_call.1} parent=1 // pred_region
      %s11 = ssub.s32 2048, 2048
      %12 = vsyncadd [#allocation3], %s11
      %s13 = sshll.u32 [#allocation2], 4
      %s14 = int_to_ptr.vmem [resolvable:$true] %s13
      %19 = dma.hbm_to_vmem [thread:$0]  %s0, 2048, %s14, [#allocation3], 128, 128, 8
    $region5: #{tpu_custom_call.1} parent=1 // pred_fallthru
      _
    // Predicated region
    $region6: #{tpu_custom_call.1} parent=1 // pred_check
      _
    $region7: #{tpu_custom_call.1} parent=1 // pred_check_branch
      %21 = sbr.rel (0) target = $region9
    $region8: #{tpu_custom_call.1} parent=1 // pred_region
      %22 = dma.done [#allocation3], 2048
    $region9: #{tpu_custom_call.1} parent=1 // pred_fallthru
      _
    %p23 = scmp.eq.s32.totalorder 0, 0
    // Predicated region
    $region10: #{tpu_custom_call.1} parent=1 // pred_check
      %p24 = pneg %p23
    $region11: #{tpu_custom_call.1} parent=1 // pred_check_branch
      %26 = sbr.rel (%p24) target = $region13
    $region12: #{tpu_custom_call.1} parent=1 // pred_region
      %vm27 = vcmask 0
      %28 = vst.msk [vmem:[#allocation5] sm:$0x1] %vm27, 0.0
    $region13: #{tpu_custom_call.1} parent=1 // pred_fallthru
      _
    %v29 = vld [vmem:[#allocation2] sm:$0xff]
    %v30 = vld [vmem:[#allocation2 + $0x8] sm:$0xff]
    %v31 = vld [vmem:[#allocation2 + $0x10] sm:$0xff]
    %v32 = vld [vmem:[#allocation2 + $0x18] sm:$0xff]
    %v33 = vld [vmem:[#allocation2 + $0x20] sm:$0xff]
    %v34 = vld [vmem:[#allocation2 + $0x28] sm:$0xff]
    %v35 = vld [vmem:[#allocation2 + $0x30] sm:$0xff]
    %v36 = vld [vmem:[#allocation2 + $0x38] sm:$0xff]
    %v37 = vld [vmem:[#allocation2 + $0x40] sm:$0xff]
    %v38 = vld [vmem:[#allocation2 + $0x48] sm:$0xff]
    %v39 = vld [vmem:[#allocation2 + $0x50] sm:$0xff]
    %v40 = vld [vmem:[#allocation2 + $0x58] sm:$0xff]
    %v41 = vld [vmem:[#allocation2 + $0x60] sm:$0xff]
    %v42 = vld [vmem:[#allocation2 + $0x68] sm:$0xff]
    %v43 = vld [vmem:[#allocation2 + $0x70] sm:$0xff]
    %v44 = vld [vmem:[#allocation2 + $0x78] sm:$0xff]
    %61 = vrot.lane.b32.xlu0 %v29, 1
    %v62 = vpop.permute.xlu0 %61
    %63 = vrot.lane.b32.xlu0 %v30, 1
    %v64 = vpop.permute.xlu0 %63
    %65 = vrot.lane.b32.xlu0 %v31, 1
    %v66 = vpop.permute.xlu0 %65
    %67 = vrot.lane.b32.xlu0 %v32, 1
    %v68 = vpop.permute.xlu0 %67
    %69 = vrot.lane.b32.xlu0 %v33, 1
    %v70 = vpop.permute.xlu0 %69
    %71 = vrot.lane.b32.xlu0 %v34, 1
    %v72 = vpop.permute.xlu0 %71
    %73 = vrot.lane.b32.xlu0 %v35, 1
    %v74 = vpop.permute.xlu0 %73
    %75 = vrot.lane.b32.xlu0 %v36, 1
    %v76 = vpop.permute.xlu0 %75
    %77 = vrot.lane.b32.xlu0 %v37, 1
    %v78 = vpop.permute.xlu0 %77
    %79 = vrot.lane.b32.xlu0 %v38, 1
    %v80 = vpop.permute.xlu0 %79
    %81 = vrot.lane.b32.xlu0 %v39, 1
    %v82 = vpop.permute.xlu0 %81
    %83 = vrot.lane.b32.xlu0 %v40, 1
    %v84 = vpop.permute.xlu0 %83
    %85 = vrot.lane.b32.xlu0 %v41, 1
    %v86 = vpop.permute.xlu0 %85
    %87 = vrot.lane.b32.xlu0 %v42, 1
    %v88 = vpop.permute.xlu0 %87
    %89 = vrot.lane.b32.xlu0 %v43, 1
    %v90 = vpop.permute.xlu0 %89
    %91 = vrot.lane.b32.xlu0 %v44, 1
    %v92 = vpop.permute.xlu0 %91
    %v109 = vsub.f32 %v29, %v62
    %v110 = vsub.f32 %v30, %v64
    %v111 = vsub.f32 %v31, %v66
    %v112 = vsub.f32 %v32, %v68
    %v113 = vsub.f32 %v33, %v70
    %v114 = vsub.f32 %v34, %v72
    %v115 = vsub.f32 %v35, %v74
    %v116 = vsub.f32 %v36, %v76
    %v117 = vsub.f32 %v37, %v78
    %v118 = vsub.f32 %v38, %v80
    %v119 = vsub.f32 %v39, %v82
    %v120 = vsub.f32 %v40, %v84
    %v121 = vsub.f32 %v41, %v86
    %v122 = vsub.f32 %v42, %v88
    %v123 = vsub.f32 %v43, %v90
    %v124 = vsub.f32 %v44, %v92
    %vm125 = vcmask 1040384
    %v126 = vrot.slane %v29, 7
    %v127 = vrot.slane %v30, 7
    %v128 = vsel %vm125, %v126, %v127
    %v129 = vrot.slane %v31, 7
    %v130 = vrot.slane %v32, 7
    %v131 = vsel %vm125, %v129, %v130
    %v132 = vrot.slane %v33, 7
    %v133 = vrot.slane %v34, 7
    %v134 = vsel %vm125, %v132, %v133
    %v135 = vrot.slane %v35, 7
    %v136 = vrot.slane %v36, 7
    %v137 = vsel %vm125, %v135, %v136
    %v138 = vrot.slane %v37, 7
    %v139 = vrot.slane %v38, 7
    %v140 = vsel %vm125, %v138, %v139
    %v141 = vrot.slane %v39, 7
    %v142 = vrot.slane %v40, 7
    %v143 = vsel %vm125, %v141, %v142
    %v144 = vrot.slane %v41, 7
    %v145 = vrot.slane %v42, 7
    %v146 = vsel %vm125, %v144, %v145
    %v147 = vrot.slane %v43, 7
    %v148 = vrot.slane %v44, 7
    %v149 = vsel %vm125, %v147, %v148
    %v166 = vsub.f32 %v29, %v126
    %v167 = vsub.f32 %v30, %v128
    %v168 = vsub.f32 %v31, %v129
    %v169 = vsub.f32 %v32, %v131
    %v170 = vsub.f32 %v33, %v132
    %v171 = vsub.f32 %v34, %v134
    %v172 = vsub.f32 %v35, %v135
    %v173 = vsub.f32 %v36, %v137
    %v174 = vsub.f32 %v37, %v138
    %v175 = vsub.f32 %v38, %v140
    %v176 = vsub.f32 %v39, %v141
    %v177 = vsub.f32 %v40, %v143
    %v178 = vsub.f32 %v41, %v144
    %v179 = vsub.f32 %v42, %v146
    %v180 = vsub.f32 %v43, %v147
    %v181 = vsub.f32 %v44, %v149
    %v182 = vmul.f32 %v109, %v109
    %v183 = vmul.f32 %v110, %v110
    %v184 = vmul.f32 %v111, %v111
    %v185 = vmul.f32 %v112, %v112
    %v186 = vmul.f32 %v113, %v113
    %v187 = vmul.f32 %v114, %v114
    %v188 = vmul.f32 %v115, %v115
    %v189 = vmul.f32 %v116, %v116
    %v190 = vmul.f32 %v117, %v117
    %v191 = vmul.f32 %v118, %v118
    %v192 = vmul.f32 %v119, %v119
    %v193 = vmul.f32 %v120, %v120
    %v194 = vmul.f32 %v121, %v121
    %v195 = vmul.f32 %v122, %v122
    %v196 = vmul.f32 %v123, %v123
    %v197 = vmul.f32 %v124, %v124
    %214 = vrot.lane.b32.xlu0 %v182, 127
    %v215 = vpop.permute.xlu0 %214
    %216 = vrot.lane.b32.xlu0 %v183, 127
    %v217 = vpop.permute.xlu0 %216
    %218 = vrot.lane.b32.xlu0 %v184, 127
    %v219 = vpop.permute.xlu0 %218
    %220 = vrot.lane.b32.xlu0 %v185, 127
    %v221 = vpop.permute.xlu0 %220
    %222 = vrot.lane.b32.xlu0 %v186, 127
    %v223 = vpop.permute.xlu0 %222
    %224 = vrot.lane.b32.xlu0 %v187, 127
    %v225 = vpop.permute.xlu0 %224
    %226 = vrot.lane.b32.xlu0 %v188, 127
    %v227 = vpop.permute.xlu0 %226
    %228 = vrot.lane.b32.xlu0 %v189, 127
    %v229 = vpop.permute.xlu0 %228
    %230 = vrot.lane.b32.xlu0 %v190, 127
    %v231 = vpop.permute.xlu0 %230
    %232 = vrot.lane.b32.xlu0 %v191, 127
    %v233 = vpop.permute.xlu0 %232
    %234 = vrot.lane.b32.xlu0 %v192, 127
    %v235 = vpop.permute.xlu0 %234
    %236 = vrot.lane.b32.xlu0 %v193, 127
    %v237 = vpop.permute.xlu0 %236
    %238 = vrot.lane.b32.xlu0 %v194, 127
    %v239 = vpop.permute.xlu0 %238
    %240 = vrot.lane.b32.xlu0 %v195, 127
    %v241 = vpop.permute.xlu0 %240
    %242 = vrot.lane.b32.xlu0 %v196, 127
    %v243 = vpop.permute.xlu0 %242
    %244 = vrot.lane.b32.xlu0 %v197, 127
    %v245 = vpop.permute.xlu0 %244
    %vm262 = vcmask 121856
    %v263 = vsel %vm262, %v215, 0.0
    %v264 = vsel %vm262, %v217, 0.0
    %v265 = vadd.f32 %v263, %v264
    %v266 = vsel %vm262, %v219, 0.0
    %v267 = vadd.f32 %v265, %v266
    %v268 = vsel %vm262, %v221, 0.0
    %v269 = vadd.f32 %v267, %v268
    %v270 = vsel %vm262, %v223, 0.0
    %v271 = vadd.f32 %v269, %v270
    %v272 = vsel %vm262, %v225, 0.0
    %v273 = vadd.f32 %v271, %v272
    %v274 = vsel %vm262, %v227, 0.0
    %v275 = vadd.f32 %v273, %v274
    %v276 = vsel %vm262, %v229, 0.0
    %v277 = vadd.f32 %v275, %v276
    %v278 = vsel %vm262, %v231, 0.0
    %v279 = vadd.f32 %v277, %v278
    %v280 = vsel %vm262, %v233, 0.0
    %v281 = vadd.f32 %v279, %v280
    %v282 = vsel %vm262, %v235, 0.0
    %v283 = vadd.f32 %v281, %v282
    %v284 = vsel %vm262, %v237, 0.0
    %v285 = vadd.f32 %v283, %v284
    %v286 = vsel %vm262, %v239, 0.0
    %v287 = vadd.f32 %v285, %v286
    %v288 = vsel %vm262, %v241, 0.0
    %v289 = vadd.f32 %v287, %v288
    %v290 = vsel %vm262, %v243, 0.0
    %v291 = vadd.f32 %v289, %v290
    %v292 = vsel %vm262, %v245, 0.0
    %v293 = vadd.f32 %v291, %v292
    %294 = vadd.xlane.f32.xlu0 %v293
    %v295 = vpop.xlane.xlu0 %294
    %v296 = vrot.slane %v295, 4
    %v297 = vadd.f32 %v295, %v296
    %v298 = vrot.slane %v297, 2
    %v299 = vadd.f32 %v297, %v298
    %v300 = vrot.slane %v299, 1
    %v301 = vadd.f32 %v299, %v300
    %s302 = vtos %v301
    %v303 = vmul.f32 %v166, %v166
    %v304 = vmul.f32 %v167, %v167
    %v305 = vmul.f32 %v168, %v168
    %v306 = vmul.f32 %v169, %v169
    %v307 = vmul.f32 %v170, %v170
    %v308 = vmul.f32 %v171, %v171
    %v309 = vmul.f32 %v172, %v172
    %v310 = vmul.f32 %v173, %v173
    %v311 = vmul.f32 %v174, %v174
    %v312 = vmul.f32 %v175, %v175
    %v313 = vmul.f32 %v176, %v176
    %v314 = vmul.f32 %v177, %v177
    %v315 = vmul.f32 %v178, %v178
    %v316 = vmul.f32 %v179, %v179
    %v317 = vmul.f32 %v180, %v180
    %v318 = vmul.f32 %v181, %v181
    %vm335 = vcmask 1046528
    %v336 = vrot.slane %v303, 1
    %v337 = vrot.slane %v304, 1
    %v338 = vsel %vm335, %v336, %v337
    %v339 = vrot.slane %v305, 1
    %v340 = vrot.slane %v306, 1
    %v341 = vsel %vm335, %v339, %v340
    %v342 = vrot.slane %v307, 1
    %v343 = vrot.slane %v308, 1
    %v344 = vsel %vm335, %v342, %v343
    %v345 = vrot.slane %v309, 1
    %v346 = vrot.slane %v310, 1
    %v347 = vsel %vm335, %v345, %v346
    %v348 = vrot.slane %v311, 1
    %v349 = vrot.slane %v312, 1
    %v350 = vsel %vm335, %v348, %v349
    %v351 = vrot.slane %v313, 1
    %v352 = vrot.slane %v314, 1
    %v353 = vsel %vm335, %v351, %v352
    %v354 = vrot.slane %v315, 1
    %v355 = vrot.slane %v316, 1
    %v356 = vsel %vm335, %v354, %v355
    %v357 = vrot.slane %v317, 1
    %v358 = vrot.slane %v318, 1
    %v359 = vsel %vm335, %v357, %v358
    %vm376 = vcmask 130048
    %v377 = vsel %vm376, %v338, 0.0
    %vm378 = vcmask 129024
    %v379 = vsel %vm378, %v337, 0.0
    %v380 = vadd.f32 %v377, %v379
    %v381 = vsel %vm376, %v341, 0.0
    %v382 = vadd.f32 %v380, %v381
    %v383 = vsel %vm378, %v340, 0.0
    %v384 = vadd.f32 %v382, %v383
    %v385 = vsel %vm376, %v344, 0.0
    %v386 = vadd.f32 %v384, %v385
    %v387 = vsel %vm378, %v343, 0.0
    %v388 = vadd.f32 %v386, %v387
    %v389 = vsel %vm376, %v347, 0.0
    %v390 = vadd.f32 %v388, %v389
    %v391 = vsel %vm378, %v346, 0.0
    %v392 = vadd.f32 %v390, %v391
    %v393 = vsel %vm376, %v350, 0.0
    %v394 = vadd.f32 %v392, %v393
    %v395 = vsel %vm378, %v349, 0.0
    %v396 = vadd.f32 %v394, %v395
    %v397 = vsel %vm376, %v353, 0.0
    %v398 = vadd.f32 %v396, %v397
    %v399 = vsel %vm378, %v352, 0.0
    %v400 = vadd.f32 %v398, %v399
    %v401 = vsel %vm376, %v356, 0.0
    %v402 = vadd.f32 %v400, %v401
    %v403 = vsel %vm378, %v355, 0.0
    %v404 = vadd.f32 %v402, %v403
    %v405 = vsel %vm376, %v359, 0.0
    %v406 = vadd.f32 %v404, %v405
    %v407 = vsel %vm378, %v358, 0.0
    %v408 = vadd.f32 %v406, %v407
    %409 = vadd.xlane.f32.xlu0 %v408
    %v410 = vpop.xlane.xlu0 %409
    %v411 = vrot.slane %v410, 4
    %v412 = vadd.f32 %v410, %v411
    %v413 = vrot.slane %v412, 2
    %v414 = vadd.f32 %v412, %v413
    %v415 = vrot.slane %v414, 1
    %v416 = vadd.f32 %v414, %v415
    %s417 = vtos %v416
    %s418 = sadd.f32 %s302, %s417
    %v419 = vld [vmem:[#allocation5] sm:$0x1]
    %v420 = vstv %s418
    %v421 = vadd.f32 %v419, %v420
    %vm422 = vcmask 0
    %423 = vst.msk [vmem:[#allocation5] sm:$0x1] %vm422, %v421
    // Predicated region
    $region14: #{tpu_custom_call.1} parent=1 // pred_check
      _
    $region15: #{tpu_custom_call.1} parent=1 // pred_check_branch
      %425 = sbr.rel (0) target = $region17
    $region16: #{tpu_custom_call.1} parent=1 // pred_region
      %s427 = ssub.s32 16, 16
      %428 = vsyncadd [#allocation4], %s427
      %s430 = sshll.u32 [#allocation5], 4
      %s431 = int_to_ptr.vmem [resolvable:$true] %s430
      %433 = dma.vmem_to_hbm [thread:$0]  %s431, 16, %s1, [#allocation4]
    $region17: #{tpu_custom_call.1} parent=1 // pred_fallthru
      _
    // Predicated region
    $region18: #{tpu_custom_call.1} parent=1 // pred_check
      _
    $region19: #{tpu_custom_call.1} parent=1 // pred_check_branch
      %435 = sbr.rel (0) target = $region21
    $region20: #{tpu_custom_call.1} parent=1 // pred_region
      %436 = dma.done [#allocation4], 16
    $region21: #{tpu_custom_call.1} parent=1 // pred_fallthru
      _
    %437 = vsyncpa [#allocation3], 1
    %438 = vsyncpa [#allocation4], 1

</llo_original>
